<compile_context>
chip_gen: v7x
topology: tpu7x:2x2x1
jax: 0.10.0
libtpu: 0.0.40
codegen_flags: <defaults>
</compile_context>

<pallas_src>
import functools

import jax
import jax.numpy as jnp
from jax.experimental import pallas as pl
from jax.experimental.pallas import tpu as pltpu


def _int_pow(x, n):
    """x**n for a static integer n >= 1 via repeated squaring (VPU multiplies only)."""
    result = None
    base = x
    while n > 0:
        if n & 1:
            result = base if result is None else result * base
        n >>= 1
        if n:
            base = base * base
    return result


def _focal_loss_kernel(logits_ref, target_ref, weight_ref, out_ref,
                       *, gamma, n_true, tile_n, needs_mask):
    i = pl.program_id(0)

    @pl.when(i == 0)
    def _init():
        out_ref[...] = jnp.zeros_like(out_ref)

    x = logits_ref[...].astype(jnp.float32)          # (TN, C)
    t = target_ref[...]                              # (TN, 1) int32
    w = weight_ref[...]                              # (1, C)  f32

    # Numerically stable log-sum-exp over the class (lane) axis.
    m = jnp.max(x, axis=-1, keepdims=True)                               # (TN, 1)
    lse = m + jnp.log(jnp.sum(jnp.exp(x - m), axis=-1, keepdims=True))   # (TN, 1)

    # One-hot selection of the target logit / target class weight (no gather on TPU).
    cls = jax.lax.broadcasted_iota(jnp.int32, x.shape, dimension=1)      # (TN, C)
    onehot = cls == t                                                    # (TN, C) bool
    logit_t = jnp.sum(jnp.where(onehot, x, 0.0), axis=-1, keepdims=True)   # (TN, 1)
    w_t = jnp.sum(jnp.where(onehot, w, 0.0), axis=-1, keepdims=True)       # (TN, 1)

    # F.cross_entropy(reduction='none', weight=w) = w[target] * (logsumexp - logit[target]).
    # Clamp >= 0 so fp rounding can never push p above 1 (NaN guard for fractional gamma).
    ce = w_t * jnp.maximum(lse - logit_t, 0.0)       # (TN, 1)

    # focal_loss: p = exp(-ce); loss = (1 - p)**gamma * ce
    p = jnp.exp(-ce)
    omp = jnp.maximum(1.0 - p, 0.0)

    g = float(gamma)
    if g == 0.0:
        loss = ce
    elif g == float(int(g)) and 1.0 <= g <= 32.0:
        loss = _int_pow(omp, int(g)) * ce            # integer gamma: VPU-only
    else:
        loss = jnp.power(omp, jnp.float32(g)) * ce   # fractional gamma

    if needs_mask:
        # Zero rows beyond N in the (partial) last tile; valid rows always pass.
        row = i * tile_n + jax.lax.broadcasted_iota(jnp.int32, loss.shape, 0)
        loss = jnp.where(row < n_true, loss, 0.0)

    out_ref[...] += jnp.sum(loss, axis=0, keepdims=True)   # running sum (resident block)

    @pl.when(i == pl.num_programs(0) - 1)
    def _finalize():
        out_ref[...] = out_ref[...] * jnp.float32(1.0 / n_true)


def _choose_tile_n(n, c, itemsize):
    # VMEM footprint per row: logits row padded to a multiple of 128 lanes in its own
    # dtype + the int32 target row (also lane-padded to 128).  Keep the double-buffered
    # total near 8 MiB -> comfortable under the 16 MiB default scoped VMEM on v5e.
    c_pad = ((c + 127) // 128) * 128
    per_row_bytes = c_pad * itemsize + 128 * 4
    budget = 8 << 20
    tn = budget // max(1, 2 * per_row_bytes)
    tn = max(8, min(2048, (tn // 8) * 8))
    n8 = ((n + 7) // 8) * 8
    return int(min(tn, n8))


def focal_loss_tpu(logits, target, weight=None, gamma=1.0, tile_n=None):
    """Pallas TPU implementation of FocalLoss.forward(input=logits, target)."""
    N, C = logits.shape
    if weight is None:
        weight = jnp.ones((C,), jnp.float32)
    weight2d = jnp.asarray(weight, jnp.float32).reshape(1, C)
    target2d = jnp.asarray(target, jnp.int32).reshape(N, 1)

    if tile_n is None:
        tile_n = _choose_tile_n(N, C, jnp.dtype(logits.dtype).itemsize)
    tile_n = max(8, (int(tile_n) // 8) * 8)

    n_blocks = pl.cdiv(N, tile_n)
    needs_mask = (n_blocks * tile_n != N)   # partial last tile -> mask its padded rows

    kernel = functools.partial(
        _focal_loss_kernel, gamma=float(gamma), n_true=N, tile_n=tile_n,
        needs_mask=needs_mask)

    out = pl.pallas_call(
        kernel,
        out_shape=jax.ShapeDtypeStruct((1, 1), jnp.float32),
        grid=(n_blocks,),
        in_specs=[
            pl.BlockSpec((tile_n, C), lambda i: (i, 0)),   # logits tile (pipelined)
            pl.BlockSpec((tile_n, 1), lambda i: (i, 0)),   # targets tile
            pl.BlockSpec((1, C), lambda i: (0, 0)),        # class weights (resident)
        ],
        out_specs=pl.BlockSpec((1, 1), lambda i: (0, 0)),  # scalar result, resident acc
        compiler_params=pltpu.CompilerParams(
            dimension_semantics=("arbitrary",)),           # batch axis is a reduction
    )(logits, target2d, weight2d)
    return out[0, 0]


def _focal_loss_ref(logits, target, weight, gamma):
    # Pure-JAX reference mirroring torch semantics.
    logp = jax.nn.log_softmax(logits.astype(jnp.float32), axis=-1)
    ce = -jnp.take_along_axis(logp, target[:, None].astype(jnp.int32), axis=-1)[:, 0]
    if weight is not None:
        ce = ce * weight[target]
    p = jnp.exp(-ce)
    return jnp.mean((1.0 - p) ** gamma * ce)


if __name__ == "__main__":
    key = jax.random.PRNGKey(0)
    k1, k2, k3 = jax.random.split(key, 3)

    N, C = 20, 8  # e.g. ISIC2019 has 8 classes
    logits = jax.random.normal(k1, (N, C), dtype=jnp.float32)
    target = jax.random.randint(k2, (N,), 0, C, dtype=jnp.int32)
    weight = jax.random.uniform(k3, (C,), dtype=jnp.float32, minval=0.5, maxval=1.5)

    # Multi-tile path (tile_n=8 -> 3 grid steps, partial last tile masked in-kernel).
    out = jax.block_until_ready(
        focal_loss_tpu(logits, target, weight=weight, gamma=2.0, tile_n=8))
    ref = _focal_loss_ref(logits, target, weight, 2.0)
    assert jnp.allclose(out, ref, rtol=1e-5, atol=1e-5), (out, ref)

    # Default single-tile path (block larger than N, partial-block handling), no weights.
    out2 = jax.block_until_ready(focal_loss_tpu(logits, target, weight=None, gamma=1.0))
    ref2 = _focal_loss_ref(logits, target, None, 1.0)
    assert jnp.allclose(out2, ref2, rtol=1e-5, atol=1e-5), (out2, ref2)

    # Fractional gamma exercises the jnp.power path with the (1 - p) clamp.
    out3 = jax.block_until_ready(
        focal_loss_tpu(logits, target, weight=weight, gamma=0.5, tile_n=8))
    ref3 = _focal_loss_ref(logits, target, weight, 0.5)
    assert jnp.allclose(out3, ref3, rtol=1e-5, atol=1e-5), (out3, ref3)

    print("KERNEL_OK")
</pallas_src>

<mosaic_0001>
module attributes {stable_mosaic.version = 11 : i64} {
  func.func @_focal_loss_kernel(%arg0: i32, %arg1: memref<8x8xf32, #tpu.memory_space<vmem>>, %arg2: memref<8x1xi32, #tpu.memory_space<vmem>>, %arg3: memref<1x8xf32, #tpu.memory_space<vmem>>, %arg4: memref<1x1xf32, #tpu.memory_space<vmem>>) attributes {dimension_semantics = [#tpu.dimension_semantics<arbitrary>], iteration_bounds = array<i64: 3>, scalar_prefetch = 0 : i64, scratch_operands = 0 : i64, tpu.core_type = #tpu.core_type<tc>, window_params = [{transform_indices = @transform_0, window_bounds = array<i64: 8, 8>}, {transform_indices = @transform_1, window_bounds = array<i64: 8, 1>}, {pipeline_mode = #tpu.pipeline_mode<synchronous>, transform_indices = @transform_2, window_bounds = array<i64: 1, 8>}, {pipeline_mode = #tpu.pipeline_mode<synchronous>, transform_indices = @transform_3, window_bounds = array<i64: 1, 1>}]} {
    %c0_i32 = arith.constant 0 : i32
    %0 = arith.cmpi eq, %arg0, %c0_i32 : i32
    %1 = arith.extui %0 : i1 to i32
    %c0_i32_0 = arith.constant 0 : i32
    %2 = arith.cmpi ne, %1, %c0_i32_0 : i32
    scf.if %2 {
      %cst_22 = arith.constant 0.000000e+00 : f32
      %57 = vector.broadcast %cst_22 : f32 to vector<1x1xf32>
      %c0_23 = arith.constant 0 : index
      %c0_24 = arith.constant 0 : index
      %58 = vector.load %arg4[%c0_23, %c0_24] : memref<1x1xf32, #tpu.memory_space<vmem>>, vector<1x1xf32>
      tpu.vector_store %arg4[%c0_23, %c0_24], %57 {strides = array<i32>} : memref<1x1xf32, #tpu.memory_space<vmem>>, vector<1x1xf32>,
    } else {
    }
    %c0 = arith.constant 0 : index
    %c0_1 = arith.constant 0 : index
    %3 = vector.load %arg1[%c0, %c0_1] : memref<8x8xf32, #tpu.memory_space<vmem>>, vector<8x8xf32>
    %c0_2 = arith.constant 0 : index
    %c0_3 = arith.constant 0 : index
    %4 = vector.load %arg2[%c0_2, %c0_3] : memref<8x1xi32, #tpu.memory_space<vmem>>, vector<8x1xi32>
    %c0_4 = arith.constant 0 : index
    %c0_5 = arith.constant 0 : index
    %5 = vector.load %arg3[%c0_4, %c0_5] : memref<1x8xf32, #tpu.memory_space<vmem>>, vector<1x8xf32>
    %cst = arith.constant dense<0xFF800000> : vector<8xf32>
    %6 = vector.multi_reduction <maximumf>, %3, %cst [1] : vector<8x8xf32> to vector<8xf32>
    %7 = vector.shape_cast %6 : vector<8xf32> to vector<8x1xf32>
    %8 = vector.broadcast %7 : vector<8x1xf32> to vector<8x8xf32>
    %9 = arith.subf %3, %8 : vector<8x8xf32>
    %10 = math.exp %9 : vector<8x8xf32>
    %cst_6 = arith.constant dense<0.000000e+00> : vector<8xf32>
    %11 = vector.multi_reduction <add>, %10, %cst_6 [1] : vector<8x8xf32> to vector<8xf32>
    %12 = vector.shape_cast %11 : vector<8xf32> to vector<8x1xf32>
    %13 = math.log %12 : vector<8x1xf32>
    %14 = arith.addf %7, %13 : vector<8x1xf32>
    %15 = tpu.iota {dimensions = array<i32: 1>} : vector<8x8xi32>
    %16 = vector.broadcast %4 : vector<8x1xi32> to vector<8x8xi32>
    %17 = arith.cmpi eq, %15, %16 : vector<8x8xi32>
    %cst_7 = arith.constant 0.000000e+00 : f32
    %18 = vector.broadcast %cst_7 : f32 to vector<8x8xf32>
    %19 = arith.select %17, %3, %18 : vector<8x8xi1>, vector<8x8xf32>
    %cst_8 = arith.constant dense<0.000000e+00> : vector<8xf32>
    %20 = vector.multi_reduction <add>, %19, %cst_8 [1] : vector<8x8xf32> to vector<8xf32>
    %21 = vector.shape_cast %20 : vector<8xf32> to vector<8x1xf32>
    %cst_9 = arith.constant 0.000000e+00 : f32
    %22 = vector.shape_cast %5 : vector<1x8xf32> to vector<1x8xf32>
    %23 = vector.broadcast %22 : vector<1x8xf32> to vector<8x8xf32>
    %24 = vector.broadcast %cst_9 : f32 to vector<8x8xf32>
    %25 = arith.select %17, %23, %24 : vector<8x8xi1>, vector<8x8xf32>
    %cst_10 = arith.constant dense<0.000000e+00> : vector<8xf32>
    %26 = vector.multi_reduction <add>, %25, %cst_10 [1] : vector<8x8xf32> to vector<8xf32>
    %27 = vector.shape_cast %26 : vector<8xf32> to vector<8x1xf32>
    %28 = arith.subf %14, %21 : vector<8x1xf32>
    %cst_11 = arith.constant 0.000000e+00 : f32
    %29 = vector.broadcast %cst_11 : f32 to vector<8x1xf32>
    %30 = arith.maximumf %28, %29 : vector<8x1xf32>
    %31 = arith.mulf %27, %30 : vector<8x1xf32>
    %cst_12 = arith.constant 0.000000e+00 : f32
    %32 = vector.broadcast %cst_12 : f32 to vector<8x1xf32>
    %33 = arith.subf %32, %31 : vector<8x1xf32>
    %34 = math.exp %33 : vector<8x1xf32>
    %cst_13 = arith.constant 1.000000e+00 : f32
    %35 = vector.broadcast %cst_13 : f32 to vector<8x1xf32>
    %36 = arith.subf %35, %34 : vector<8x1xf32>
    %cst_14 = arith.constant 0.000000e+00 : f32
    %37 = vector.broadcast %cst_14 : f32 to vector<8x1xf32>
    %38 = arith.maximumf %36, %37 : vector<8x1xf32>
    %39 = arith.mulf %38, %38 : vector<8x1xf32>
    %40 = arith.mulf %39, %31 : vector<8x1xf32>
    %c8_i32 = arith.constant 8 : i32
    %41 = arith.muli %arg0, %c8_i32 : i32
    %42 = tpu.iota {dimensions = array<i32: 0>} : vector<8x1xi32>
    %43 = vector.broadcast %41 : i32 to vector<8x1xi32>
    %44 = arith.addi %43, %42 : vector<8x1xi32>
    %c20_i32 = arith.constant 20 : i32
    %45 = vector.broadcast %c20_i32 : i32 to vector<8x1xi32>
    %46 = arith.cmpi slt, %44, %45 : vector<8x1xi32>
    %cst_15 = arith.constant 0.000000e+00 : f32
    %47 = vector.broadcast %cst_15 : f32 to vector<8x1xf32>
    %48 = arith.select %46, %40, %47 : vector<8x1xi1>, vector<8x1xf32>
    %c0_16 = arith.constant 0 : index
    %c0_17 = arith.constant 0 : index
    %49 = vector.load %arg4[%c0_16, %c0_17] : memref<1x1xf32, #tpu.memory_space<vmem>>, vector<1x1xf32>
    %cst_18 = arith.constant dense<0.000000e+00> : vector<1xf32>
    %50 = vector.multi_reduction <add>, %48, %cst_18 [0] : vector<8x1xf32> to vector<1xf32>
    %51 = vector.shape_cast %50 : vector<1xf32> to vector<1x1xf32>
    %52 = arith.addf %49, %51 : vector<1x1xf32>
    %c0_19 = arith.constant 0 : index
    %c0_20 = arith.constant 0 : index
    %53 = vector.load %arg4[%c0_19, %c0_20] : memref<1x1xf32, #tpu.memory_space<vmem>>, vector<1x1xf32>
    tpu.vector_store %arg4[%c0_19, %c0_20], %52 {strides = array<i32>} : memref<1x1xf32, #tpu.memory_space<vmem>>, vector<1x1xf32>,
    %c2_i32 = arith.constant 2 : i32
    %54 = arith.cmpi eq, %arg0, %c2_i32 : i32
    %55 = arith.extui %54 : i1 to i32
    %c0_i32_21 = arith.constant 0 : i32
    %56 = arith.cmpi ne, %55, %c0_i32_21 : i32
    scf.if %56 {
      %c0_22 = arith.constant 0 : index
      %c0_23 = arith.constant 0 : index
      %57 = vector.load %arg4[%c0_22, %c0_23] : memref<1x1xf32, #tpu.memory_space<vmem>>, vector<1x1xf32>
      %cst_24 = arith.constant 5.000000e-02 : f32
      %58 = vector.broadcast %cst_24 : f32 to vector<1x1xf32>
      %59 = arith.mulf %57, %58 : vector<1x1xf32>
      %c0_25 = arith.constant 0 : index
      %c0_26 = arith.constant 0 : index
      %60 = vector.load %arg4[%c0_25, %c0_26] : memref<1x1xf32, #tpu.memory_space<vmem>>, vector<1x1xf32>
      tpu.vector_store %arg4[%c0_25, %c0_26], %59 {strides = array<i32>} : memref<1x1xf32, #tpu.memory_space<vmem>>, vector<1x1xf32>,
    } else {
    }
    return
  }
  func.func @transform_0(%arg0: i32) -> (i32, i32) {
    %c0_i32 = arith.constant 0 : i32
    %c0_i32_0 = arith.constant 0 : i32
    return %arg0, %c0_i32 : i32, i32
  }
  func.func @transform_1(%arg0: i32) -> (i32, i32) {
    %c0_i32 = arith.constant 0 : i32
    %c0_i32_0 = arith.constant 0 : i32
    return %arg0, %c0_i32 : i32, i32
  }
  func.func @transform_2(%arg0: i32) -> (i32, i32) {
    %c0_i32 = arith.constant 0 : i32
    %c0_i32_0 = arith.constant 0 : i32
    %c0_i32_1 = arith.constant 0 : i32
    return %c0_i32, %c0_i32_0 : i32, i32
  }
  func.func @transform_3(%arg0: i32) -> (i32, i32) {
    %c0_i32 = arith.constant 0 : i32
    %c0_i32_0 = arith.constant 0 : i32
    %c0_i32_1 = arith.constant 0 : i32
    return %c0_i32, %c0_i32_0 : i32, i32
  }
}

</mosaic_0001>

<llo_original>
// kernel: tpu_custom_call.1
$region0: #{tpu_custom_call.1}
  #allocation0 [shape = 'u32[]', space=smem, size = 0x4, offset = 0x4, fixed_abs, tag = 'smem constant byte address 0x4 - core index']
  #allocation1 [shape = 'u32[144,128]{1,0:T(1,128)}', space=vmem, size = 0x12000, scoped, tag = 'internal scratch']
  %s0 = inlined_call_operand.vmem [shape: f32[20,8], index: 0, kind: input, shape index: {}]
  %s1 = inlined_call_operand.vmem [shape: s32[20,1], index: 1, kind: input, shape index: {}]
  %s2 = inlined_call_operand.vmem [shape: f32[1,8], index: 2, kind: input, shape index: {}]
  %s3 = inlined_call_operand.hbm [shape: f32[1,1], index: 3, kind: output, shape index: {}]
  %s4 = sld [smem:[#allocation0]]
  $region53: #{tpu_custom_call.1} parent=0
    _
  %s6 = ssub.s32 1, %s4
  %s7 = scalar_select 0, %s6, %s4
  $region1: #{tpu_custom_call.1} parent=0
    #allocation2 [shape = 'u8[512]{0}', space=vmem, size = 0x400, scoped, tag = 'output window, operand 0, single buffered']
    #allocation3 [shape = 's32[2]{0}', space=sflag, size = 0x8, scoped, tag = 'scoped memory for tpu_custom_call.1']
    %8 = vsyncpa [#allocation3], 0
    loop: start=0, step=1, limit=5
    $region2: #{tpu_custom_call.1} parent=1 // loop_pre_header
      _
    $region3: #{tpu_custom_call.1} parent=1 // loop_header
      %s10 = sphi 0, %s14
      %p11 = scmp.ge.s32.totalorder %s10, 5
      %s20 = sphi 0, %s22
      %s23 = sphi 0, %s20
      %s24 = sphi 0, %s23
      %s40 = sphi 0, %s24
      %s46 = sphi 0, %s48
      %s49 = sphi 0, %s46
      %s50 = sphi 0, %s49
      %s66 = sphi 0, %s50
      %s70 = sphi 0, %s70
      %s72 = sphi 0, %s70
      %s73 = sphi 0, %s72
      %s87 = sphi 0, %s73
      %s91 = sphi 0, %s91
      %s93 = sphi 0, %s91
      %s94 = sphi 0, %s93
      %s108 = sphi 0, %s94
    $region4: #{tpu_custom_call.1} parent=1 // loop_header_branch
      %13 = sbr.rel (%p11) target = $region8
    $region5: #{tpu_custom_call.1} parent=1 // loop_body
      %s15 = ssub.s32 %s10, 1
      %s16 = ssub.s32 %s10, 2
      %s17 = sadd.s32 %s10, 1
      %s18 = ssub.s32 %s10, %s17
      %p19 = scmp.eq.s32.totalorder %s18, 0
      %s21 = sadd.s32 %s20, 1
      %s22 = scalar_select %p19, %s20, %s21
      %p25 = pneg %p19
      %p26 = scmp.eq.s32.totalorder %s10, 2
      %p27 = por %p25, %p26
      %p28 = scmp.ne.s32.totalorder %s20, %s23
      %p29 = scmp.eq.s32.totalorder %s10, 0
      %p30 = por %p28, %p29
      %p31 = scmp.ne.s32.totalorder %s20, %s23
      %p32 = scmp.eq.s32.totalorder %s15, 2
      %p33 = por %p31, %p32
      %p34 = scmp.ne.s32.totalorder %s23, %s24
      %p35 = scmp.eq.s32.totalorder %s15, 0
      %p36 = por %p34, %p35
      %p37 = scmp.ne.s32.totalorder %s23, %s24
      %p38 = scmp.eq.s32.totalorder %s16, 2
      %p39 = por %p37, %p38
      %p41 = scmp.ne.s32.totalorder %s24, %s40
      %p42 = scmp.eq.s32.totalorder %s16, 0
      %p43 = por %p41, %p42
      %s44 = ssub.s32 %s10, %s17
      %p45 = scmp.eq.s32.totalorder %s44, 0
      %s47 = sadd.s32 %s46, 1
      %s48 = scalar_select %p45, %s46, %s47
      %p51 = pneg %p45
      %p52 = scmp.eq.s32.totalorder %s10, 2
      %p53 = por %p51, %p52
      %p54 = scmp.ne.s32.totalorder %s46, %s49
      %p55 = scmp.eq.s32.totalorder %s10, 0
      %p56 = por %p54, %p55
      %p57 = scmp.ne.s32.totalorder %s46, %s49
      %p58 = scmp.eq.s32.totalorder %s15, 2
      %p59 = por %p57, %p58
      %p60 = scmp.ne.s32.totalorder %s49, %s50
      %p61 = scmp.eq.s32.totalorder %s15, 0
      %p62 = por %p60, %p61
      %p63 = scmp.ne.s32.totalorder %s49, %s50
      %p64 = scmp.eq.s32.totalorder %s16, 2
      %p65 = por %p63, %p64
      %p67 = scmp.ne.s32.totalorder %s50, %s66
      %p68 = scmp.eq.s32.totalorder %s16, 0
      %p69 = por %p67, %p68
      %s71 = sadd.s32 %s70, 1
      %p74 = scmp.eq.s32.totalorder %s10, 2
      %p75 = scmp.ne.s32.totalorder %s70, %s72
      %p76 = scmp.eq.s32.totalorder %s10, 0
      %p77 = por %p75, %p76
      %p78 = scmp.ne.s32.totalorder %s70, %s72
      %p79 = scmp.eq.s32.totalorder %s15, 2
      %p80 = por %p78, %p79
      %p81 = scmp.ne.s32.totalorder %s72, %s73
      %p82 = scmp.eq.s32.totalorder %s15, 0
      %p83 = por %p81, %p82
      %p84 = scmp.ne.s32.totalorder %s72, %s73
      %p85 = scmp.eq.s32.totalorder %s16, 2
      %p86 = por %p84, %p85
      %p88 = scmp.ne.s32.totalorder %s73, %s87
      %p89 = scmp.eq.s32.totalorder %s16, 0
      %p90 = por %p88, %p89
      %s92 = sadd.s32 %s91, 1
      %p95 = scmp.eq.s32.totalorder %s10, 2
      %p96 = scmp.ne.s32.totalorder %s91, %s93
      %p97 = scmp.eq.s32.totalorder %s10, 0
      %p98 = por %p96, %p97
      %p99 = scmp.ne.s32.totalorder %s91, %s93
      %p100 = scmp.eq.s32.totalorder %s15, 2
      %p101 = por %p99, %p100
      %p102 = scmp.ne.s32.totalorder %s93, %s94
      %p103 = scmp.eq.s32.totalorder %s15, 0
      %p104 = por %p102, %p103
      %p105 = scmp.ne.s32.totalorder %s93, %s94
      %p106 = scmp.eq.s32.totalorder %s16, 2
      %p107 = por %p105, %p106
      %p109 = scmp.ne.s32.totalorder %s94, %s108
      %p110 = scmp.eq.s32.totalorder %s16, 0
      %p111 = por %p109, %p110
      %p112 = scmp.le.s32.totalorder 1, %s10
      %p113 = scmp.lt.s32.totalorder %s10, 4
      %p114 = pnand %p112, %p113
      %p115 = pneg %p114
      // Predicated region
      $region9: #{tpu_custom_call.1} parent=5 // pred_check
        _
      $region10: #{tpu_custom_call.1} parent=5 // pred_check_branch
        %117 = sbr.rel (%p114) target = $region12
      $region11: #{tpu_custom_call.1} parent=5 // pred_region
        %s118 = ssub.s32 %s10, 1
        // Predicated region
        $region13: #{tpu_custom_call.1} parent=11 // pred_check
          %p119 = pneg %p83
        $region14: #{tpu_custom_call.1} parent=11 // pred_check_branch
          %121 = sbr.rel (%p119) target = $region16
        $region15: #{tpu_custom_call.1} parent=11 // pred_region
          _
        $region16: #{tpu_custom_call.1} parent=11 // pred_fallthru
          _
      $region12: #{tpu_custom_call.1} parent=5 // pred_fallthru
        _
      %p122 = scmp.lt.s32.totalorder %s10, 3
      // Predicated region
      $region17: #{tpu_custom_call.1} parent=5 // pred_check
        %p123 = pneg %p122
      $region18: #{tpu_custom_call.1} parent=5 // pred_check_branch
        %125 = sbr.rel (%p123) target = $region20
      $region19: #{tpu_custom_call.1} parent=5 // pred_region
        // Predicated region
        $region21: #{tpu_custom_call.1} parent=19 // pred_check
          %p126 = pneg %p30
        $region22: #{tpu_custom_call.1} parent=19 // pred_check_branch
          %128 = sbr.rel (%p126) target = $region24
        $region23: #{tpu_custom_call.1} parent=19 // pred_region
          %p129 = scmp.lt.s32.totalorder %s10, 2
          %s130 = scalar_select %p129, %s10, 2
          %s131 = smul.addr %s130, 8
          %s132 = scalar_lea.vmem %s0, %s131
        $region24: #{tpu_custom_call.1} parent=19 // pred_fallthru
          _
        // Predicated region
        $region25: #{tpu_custom_call.1} parent=19 // pred_check
          %p133 = pneg %p56
        $region26: #{tpu_custom_call.1} parent=19 // pred_check_branch
          %135 = sbr.rel (%p133) target = $region28
        $region27: #{tpu_custom_call.1} parent=19 // pred_region
          %p136 = scmp.lt.s32.totalorder %s10, 2
          %s137 = scalar_select %p136, %s10, 2
          %s138 = smul.addr %s137, 8
          %s139 = scalar_lea.vmem %s1, %s138
        $region28: #{tpu_custom_call.1} parent=19 // pred_fallthru
          _
      $region20: #{tpu_custom_call.1} parent=5 // pred_fallthru
        _
      %p140 = scmp.le.s32.totalorder 1, %s10
      %p141 = scmp.lt.s32.totalorder %s10, 4
      %p142 = pnand %p140, %p141
      %p143 = pneg %p142
      // Predicated region
      $region29: #{tpu_custom_call.1} parent=5 // pred_check
        _
      $region30: #{tpu_custom_call.1} parent=5 // pred_check_branch
        %145 = sbr.rel (%p142) target = $region32
      $region31: #{tpu_custom_call.1} parent=5 // pred_region
        %s146 = ssub.s32 %s10, 1
        %p147 = scmp.lt.s32.totalorder %s15, 2
        %s148 = scalar_select %p147, %s15, 2
        %s149 = smul.addr %s148, 8
        %s150 = scalar_lea.vmem %s0, %s149
        %p151 = pneg %p36
        %p152 = pneg %p33
        %p153 = scmp.lt.s32.totalorder %s15, 2
        %s154 = scalar_select %p153, %s15, 2
        %s155 = smul.addr %s154, 8
        %s156 = scalar_lea.vmem %s1, %s155
        %p157 = pneg %p62
        %p158 = pneg %p59
        %p159 = pneg %p83
        %p160 = pneg %p80
        %p161 = pneg %p104
        %p162 = pneg %p101
        %p163 = scmp.lt.s32.totalorder %s15, 2
        %s164 = scalar_select %p163, %s15, 2
        %s165 = smul.addr %s164, 8
        %s166 = scalar_lea.vmem %s0, %s165
        %p167 = scmp.lt.s32.totalorder %s15, 2
        %s168 = scalar_select %p167, %s15, 2
        %s169 = smul.addr %s168, 8
        %s170 = scalar_lea.vmem %s1, %s169
        %p171 = scmp.eq.s32.totalorder %s15, 0
        // Predicated region
        $region33: #{tpu_custom_call.1} parent=31 // pred_check
          %p172 = pneg %p171
        $region34: #{tpu_custom_call.1} parent=31 // pred_check_branch
          %174 = sbr.rel (%p172) target = $region36
        $region35: #{tpu_custom_call.1} parent=31 // pred_region
          %vm175 = vcmask 0
          %176 = vst.msk [vmem:[#allocation2] sm:$0x1] %vm175, 0.0
        $region36: #{tpu_custom_call.1} parent=31 // pred_fallthru
          _
        %v177 = vld [vmem:[%s166] sm:$0xff]
        %v178 = vld [vmem:[%s170] sm:$0xff]
        %v179 = vld [vmem:[%s2] sm:$0x1]
        %vm180 = vcmask 64512
        %v181 = vsel %vm180, %v177, -inf
        %182 = vmax.xlane.f32.xlu0 %v181
        %v183 = vpop.xlane.xlu0 %182
        %v184 = vsub.f32 %v177, %v183
        %v185 = vmul.f32 %v184, 1.442695
        %v186 = vpow.pop %v185
        %v187 = vsel %vm180, %v186, 0.0
        %188 = vadd.xlane.f32.xlu0 %v187
        %v189 = vpop.xlane.xlu0 %188
        %v190 = vlog2.pop %v189
        %v191 = vmul.f32 %v190, 0.6931472
        %v192 = vadd.f32 %v183, %v191
        %v193 = vlaneseq
        %v194 = vand.u32 %v193, 127
        %195 = vset.pattern.permute.xlu0 0
        %196 = vperm.xlu0 %195, %v178
        %v197 = vpop.permute.xlu0 %196
        %vm198 = vcmp.eq.s32.totalorder %v194, %v197
        %v199 = vsel %vm198, %v177, 0.0
        %v200 = vsel %vm180, %v199, 0.0
        %201 = vadd.xlane.f32.xlu0 %v200
        %v202 = vpop.xlane.xlu0 %201
        %v204 = vlaneseq
        %v205 = vshrl.u32 %v204, 7
        %v206 = vsub.s32 0, %v205
        %v207 = vrot.slane %v179, %v206
        %v209 = vsel %vm198, %v207, 0.0
        %v210 = vsel %vm180, %v209, 0.0
        %211 = vadd.xlane.f32.xlu0 %v210
        %v212 = vpop.xlane.xlu0 %211
        %v213 = vsub.f32 %v192, %v202
        %v214 = vmax.f32 %v213, 0.0
        %v215 = vmul.f32 %v212, %v214
        %v216 = vsub.f32 0.0, %v215
        %v217 = vmul.f32 %v216, 1.442695
        %v218 = vpow.pop %v217
        %v219 = vsub.f32 1.0, %v218
        %v220 = vmax.f32 %v219, 0.0
        %v221 = vmul.f32 %v220, %v220
        %v222 = vmul.f32 %v221, %v215
        %s223 = smul.u32 %s15, 8
        %v224 = vlaneseq
        %v225 = vshrl.u32 %v224, 7
        %v226 = vstv %s223
        %v227 = vadd.s32 %v226, %v225
        %vm228 = vcmp.lt.s32.totalorder %v227, 20
        %v229 = vsel %vm228, %v222, 0.0
        %v230 = vld [vmem:[#allocation2] sm:$0x1]
        %v231 = vrot.slane %v229, 4
        %v232 = vadd.f32 %v229, %v231
        %v233 = vrot.slane %v232, 2
        %v234 = vadd.f32 %v232, %v233
        %v235 = vrot.slane %v234, 1
        %v236 = vadd.f32 %v234, %v235
        %v237 = vadd.f32 %v230, %v236
        %vm238 = vcmask 0
        %239 = vst.msk [vmem:[#allocation2] sm:$0x1] %vm238, %v237
        %p240 = scmp.eq.s32.totalorder %s15, 2
        // Predicated region
        $region37: #{tpu_custom_call.1} parent=31 // pred_check
          %p241 = pneg %p240
        $region38: #{tpu_custom_call.1} parent=31 // pred_check_branch
          %243 = sbr.rel (%p241) target = $region40
        $region39: #{tpu_custom_call.1} parent=31 // pred_region
          %v244 = vld [vmem:[#allocation2] sm:$0x1]
          %v245 = vmul.f32 %v244, 0.05
          %246 = vst.msk [vmem:[#allocation2] sm:$0x1] %vm238, %v245
        $region40: #{tpu_custom_call.1} parent=31 // pred_fallthru
          _
        // Predicated region
        $region41: #{tpu_custom_call.1} parent=31 // pred_check
          %p247 = pneg %p101
        $region42: #{tpu_custom_call.1} parent=31 // pred_check_branch
          %249 = sbr.rel (%p247) target = $region44
        $region43: #{tpu_custom_call.1} parent=31 // pred_region
          %s251 = ssub.s32 16, 16
          %252 = vsyncadd [#allocation3], %s251
          %s254 = sshll.u32 [#allocation2], 4
          %s255 = int_to_ptr.vmem [resolvable:$true] %s254
          %257 = dma.vmem_to_hbm [thread:$0]  %s255, 16, %s3, [#allocation3]
        $region44: #{tpu_custom_call.1} parent=31 // pred_fallthru
          _
        // Predicated region
        $region45: #{tpu_custom_call.1} parent=31 // pred_check
          %p258 = pneg %p101
        $region46: #{tpu_custom_call.1} parent=31 // pred_check_branch
          %260 = sbr.rel (%p258) target = $region48
        $region47: #{tpu_custom_call.1} parent=31 // pred_region
          %261 = dma.done [#allocation3], 16
        $region48: #{tpu_custom_call.1} parent=31 // pred_fallthru
          _
      $region32: #{tpu_custom_call.1} parent=5 // pred_fallthru
        _
      %p262 = scmp.le.s32.totalorder 2, %s10
      // Predicated region
      $region49: #{tpu_custom_call.1} parent=5 // pred_check
        %p263 = pneg %p262
      $region50: #{tpu_custom_call.1} parent=5 // pred_check_branch
        %265 = sbr.rel (%p263) target = $region52
      $region51: #{tpu_custom_call.1} parent=5 // pred_region
        %s266 = ssub.s32 %s10, 2
      $region52: #{tpu_custom_call.1} parent=5 // pred_fallthru
        _
    $region6: #{tpu_custom_call.1} parent=1 // loop_footer
      %s14 = sadd.s32 1, %s10
    $region7: #{tpu_custom_call.1} parent=1 // loop_footer_branch
      %9 = sbr.rel target = $region3
    $region8: #{tpu_custom_call.1} parent=1 // loop_exit
      _
    %267 = vsyncpa [#allocation3], 1
    %s268 = scalar_lea.sflag [#allocation3], 1
    %269 = vsyncpa %s268, 1

</llo_original>
